<compile_context>
chip_gen: v6e
topology: v6e:2x2x1
jax: 0.10.0
libtpu: 0.0.40
codegen_flags: <defaults>
</compile_context>

<pallas_src>
import functools
import math

import jax
import jax.numpy as jnp
from jax import lax
from jax.experimental import pallas as pl
from jax.experimental.pallas import tpu as pltpu

_COMPUTE_DTYPE = jnp.bfloat16   # MXU operand dtype (accumulation is always f32)
_NEG_SLOPE = 0.1                # nn.LeakyReLU(0.1)
_MASK_FILL = -1e16              # masked_fill value from the PyTorch module


def _elu(x):
    # ELU(alpha=1); exp maps to the EUP slot -> effectively free.
    return jnp.where(x > 0.0, x, jnp.exp(x) - 1.0)


# ------------------------------ Pallas kernel --------------------------------
def _masked_attention(z, bias):
    """Inner-product GAT attention on a stacked tile (rows = all problems).

    z:    (M, D) bf16 projected features (M = groups * nodes)
    bias: (M, M) f32 additive mask: 0 on same-group edges, -1e16 elsewhere
    Returns (M, D) f32 aggregated features.
    """
    # s = z @ z^T as a transposed contraction -> no materialized transpose.
    s = lax.dot_general(z, z, dimension_numbers=(((1,), (1,)), ((), ())),
                        preferred_element_type=jnp.float32)          # (M,M) f32
    # LeakyReLU(0.1) as one max; adjacency/group mask as an additive bias.
    # The (s == 0 -> -1e16) select preserves the PyTorch masked_fill quirk.
    a = jnp.where(s != 0.0,
                  jnp.maximum(s, _NEG_SLOPE * s) + bias,
                  jnp.float32(_MASK_FILL))
    # Row softmax in f32; masked columns underflow to exactly 0 after exp.
    a_max = jnp.max(a, axis=-1, keepdims=True)
    p = jnp.exp(a - a_max)
    p = p * pl.reciprocal(jnp.sum(p, axis=-1, keepdims=True), approx=True)
    # Aggregate: softmax(a) @ z with bf16 operands, f32 accumulation (MXU).
    return jnp.dot(p.astype(z.dtype), z, preferred_element_type=jnp.float32)


def _gat_fused_kernel(hx_ref, w1_ref, w2_ref, bias1_ref, bias2_ref, out_ref,
                      z1_ref, *, num_heads, rows_per_head):
    """Full 2-layer GAT forward in one invocation; everything VMEM-resident.

    hx_ref:    (bc*N, F)           bf16  flattened input features
    w1_ref:    (H, F, D)           bf16  layer-1 per-head weights
    w2_ref:    (H, D, O)           bf16  layer-2 weights split per head
    bias1_ref: (H*bc*N, H*bc*N)    f32   block-diagonal additive mask, layer 1
    bias2_ref: (bc*N, bc*N)        f32   block-diagonal additive mask, layer 2
    out_ref:   (bc*N, O)           f32   final output
    z1_ref:    (H*bc*N, D)         bf16  VMEM scratch: head-stacked layer-1 z
    """
    BN = rows_per_head                                   # = bc * N

    hx = hx_ref[...]                                     # (bc*N, F) bf16
    # Layer-1 projections: one small matmul per head (static unroll), results
    # stacked head-major along M so the attention matmuls see H*bc*N rows.
    for hh in range(num_heads):
        zh = jnp.dot(hx, w1_ref[hh], preferred_element_type=jnp.float32)
        z1_ref[hh * BN:(hh + 1) * BN, :] = zh.astype(z1_ref.dtype)
    z1 = z1_ref[...]                                     # (H*bc*N, D) bf16

    # Layer-1 attention on the stacked problem + fused inter-layer ELU.
    h1 = _elu(_masked_attention(z1, bias1_ref[...])).astype(z1.dtype)

    # Layer-2 projection: concat(heads, dim=-1) @ W2  ==  sum_h  h1_h @ W2_h.
    z2 = jnp.dot(h1[0:BN, :], w2_ref[0], preferred_element_type=jnp.float32)
    for hh in range(1, num_heads):
        z2 = z2 + jnp.dot(h1[hh * BN:(hh + 1) * BN, :], w2_ref[hh],
                          preferred_element_type=jnp.float32)
    z2 = z2.astype(z1.dtype)                             # (bc*N, O) bf16

    # Layer-2 attention (single head, batches stacked along M). No ELU.
    out_ref[...] = _masked_attention(z2, bias2_ref[...]).astype(out_ref.dtype)


# ------------------------------- Wrapper --------------------------------------
def _block_bias(adj_f32, groups):
    """(groups*N, groups*N) additive mask: 0 on same-group edges, -1e16 else."""
    blk = jnp.kron(jnp.eye(groups, dtype=jnp.float32), adj_f32)
    return jnp.where(blk > 0.0, 0.0, jnp.float32(_MASK_FILL))


def gat_forward(h, params, adj_mask):
    """h: (bc, nodes, seq_len*feature_size) f32 -> (bc, 1, nodes, out_dim) f32."""
    W1 = params["W1"]                                    # (H, F, hidden)
    W2 = params["W2"]                                    # (H*hidden, out_dim)
    bc, N, F = h.shape
    H, _, D = W1.shape
    O = W2.shape[1]

    hx = h.reshape(bc * N, F).astype(_COMPUTE_DTYPE)     # free metadata reshape
    w1 = W1.astype(_COMPUTE_DTYPE)
    w2 = W2.reshape(H, D, O).astype(_COMPUTE_DTYPE)
    adj_f32 = (adj_mask != 0).astype(jnp.float32)        # (N, N) 0/1
    bias1 = _block_bias(adj_f32, bc * H)                 # (H*bc*N, H*bc*N)
    bias2 = _block_bias(adj_f32, bc)                     # (bc*N, bc*N)

    kernel = functools.partial(_gat_fused_kernel,
                               num_heads=H, rows_per_head=bc * N)
    out = pl.pallas_call(
        kernel,
        # No grid: one kernel invocation; every operand is a single whole-array
        # block resident in VMEM (total footprint ~50 KiB at these shapes).
        out_shape=jax.ShapeDtypeStruct((bc * N, O), jnp.float32),
        scratch_shapes=[pltpu.VMEM((H * bc * N, D), _COMPUTE_DTYPE)],
    )(hx, w1, w2, bias1, bias2)
    return out.reshape(bc, N, O)[:, None]                # == unsqueeze(1)


# ------------------------- Pure-JAX reference path ----------------------------
def gat_forward_ref(h, params, adj_mask):
    """Follows the PyTorch op order (innerprod variant) at matching precision."""
    W1 = params["W1"]
    W2 = params["W2"]
    H = W1.shape[0]
    mask = (adj_mask != 0).astype(jnp.float32)[None]     # (1, N, N)

    def gat_layer(x, W):
        z = jnp.einsum("bnf,fd->bnd", x.astype(_COMPUTE_DTYPE),
                       W.astype(_COMPUTE_DTYPE),
                       preferred_element_type=jnp.float32).astype(_COMPUTE_DTYPE)
        s = jnp.einsum("bnd,bmd->bnm", z, z, preferred_element_type=jnp.float32)
        a = jnp.where(s > 0.0, s, _NEG_SLOPE * s) * mask
        a = jnp.where(a == 0.0, jnp.float32(_MASK_FILL), a)
        p = jax.nn.softmax(a, axis=-1)
        return jnp.einsum("bnm,bmd->bnd", p.astype(_COMPUTE_DTYPE), z,
                          preferred_element_type=jnp.float32)

    head_outs = [gat_layer(h, W1[i]) for i in range(H)]  # each (bc, N, D)
    h1 = _elu(jnp.concatenate(head_outs, axis=-1))       # (bc, N, H*D)
    h2 = gat_layer(h1, W2)                               # (bc, N, O)
    return h2[:, None]                                   # (bc, 1, N, O)


# --------------------------- Parameter init -----------------------------------
def _xavier_normal(key, shape, gain=1.414):
    fan_in, fan_out = shape[-2], shape[-1]
    std = gain * math.sqrt(2.0 / (fan_in + fan_out))
    return std * jax.random.normal(key, shape, dtype=jnp.float32)


def init_gat_params(key, feat, hidden_dim, out_dim, num_heads):
    k1, k2 = jax.random.split(key)
    head_keys = jax.random.split(k1, num_heads)
    W1 = jnp.stack([_xavier_normal(k, (feat, hidden_dim)) for k in head_keys])
    W2 = _xavier_normal(k2, (hidden_dim * num_heads, out_dim))
    # NOTE: atten_W exists in the PyTorch __init__ but is unused by the
    # innerprod forward path, so it is not materialized here.
    return {"W1": W1, "W2": W2}


# ---------------------------------- Main ---------------------------------------
if __name__ == "__main__":
    bc = 2
    nodes = 16
    seq_len = 4
    feature_size = 4
    hidden_dim = 32
    out_dim = 8
    num_heads = 2
    feat = seq_len * feature_size

    key = jax.random.PRNGKey(0)
    k_h, k_adj, k_p = jax.random.split(key, 3)

    # input features [bc, nodes, seq_len*feature_size]
    h = jax.random.normal(k_h, (bc, nodes, feat), dtype=jnp.float32)

    # deterministic sparse adjacency -> dense int8 0/1 mask (with self loops)
    adj = (jax.random.uniform(k_adj, (nodes, nodes)) < 0.3) | jnp.eye(nodes, dtype=bool)
    mask_i8 = adj.astype(jnp.int8)

    params = init_gat_params(k_p, feat, hidden_dim, out_dim, num_heads)

    fwd = jax.jit(gat_forward)
    out = jax.block_until_ready(fwd(h, params, mask_i8))

    ref = gat_forward_ref(h, params, mask_i8)
    assert out.shape == (bc, 1, nodes, out_dim), out.shape
    max_diff = float(jnp.max(jnp.abs(out - ref)))
    # bf16 matmul operands + approx softmax reciprocal -> bf16-level tolerance
    assert jnp.allclose(out, ref, atol=5e-2, rtol=5e-2), max_diff

    print("KERNEL_OK")
</pallas_src>

<mosaic_0001>
module attributes {stable_mosaic.version = 11 : i64} {
  func.func @_gat_fused_kernel(%arg0: memref<32x16xbf16, #tpu.memory_space<vmem>>, %arg1: memref<2x16x32xbf16, #tpu.memory_space<vmem>>, %arg2: memref<2x32x8xbf16, #tpu.memory_space<vmem>>, %arg3: memref<64x64xf32, #tpu.memory_space<vmem>>, %arg4: memref<32x32xf32, #tpu.memory_space<vmem>>, %arg5: memref<32x8xf32, #tpu.memory_space<vmem>>, %arg6: memref<64x32xbf16, #tpu.memory_space<vmem>>) attributes {dimension_semantics = [], scalar_prefetch = 0 : i64, scratch_operands = 1 : i64, tpu.core_type = #tpu.core_type<tc>} {
    %c0 = arith.constant 0 : index
    %c0_0 = arith.constant 0 : index
    %0 = vector.load %arg0[%c0, %c0_0] : memref<32x16xbf16, #tpu.memory_space<vmem>>, vector<32x16xbf16>
    %c0_1 = arith.constant 0 : index
    %c0_2 = arith.constant 0 : index
    %c0_3 = arith.constant 0 : index
    %1 = vector.load %arg1[%c0_1, %c0_2, %c0_3] : memref<2x16x32xbf16, #tpu.memory_space<vmem>>, vector<1x16x32xbf16>
    %2 = vector.shape_cast %1 : vector<1x16x32xbf16> to vector<16x32xbf16>
    %cst = arith.constant dense<0.000000e+00> : vector<32x32xf32>
    %3 = tpu.matmul %0, %2, %cst {dimension_numbers = #tpu.dot_dimension_numbers<[1], [0], [0], [1], [0, 0, 1, 1], [], []>} : vector<32x16xbf16>, vector<16x32xbf16>, vector<32x32xf32> -> vector<32x32xf32>
    %4 = arith.truncf %3 : vector<32x32xf32> to vector<32x32xbf16>
    %c0_4 = arith.constant 0 : index
    %c0_5 = arith.constant 0 : index
    %5 = vector.load %arg6[%c0_4, %c0_5] : memref<64x32xbf16, #tpu.memory_space<vmem>>, vector<32x32xbf16>
    tpu.vector_store %arg6[%c0_4, %c0_5], %4 {strides = array<i32>} : memref<64x32xbf16, #tpu.memory_space<vmem>>, vector<32x32xbf16>,
    %c1 = arith.constant 1 : index
    %c0_6 = arith.constant 0 : index
    %c0_7 = arith.constant 0 : index
    %6 = vector.load %arg1[%c1, %c0_6, %c0_7] : memref<2x16x32xbf16, #tpu.memory_space<vmem>>, vector<1x16x32xbf16>
    %7 = vector.shape_cast %6 : vector<1x16x32xbf16> to vector<16x32xbf16>
    %cst_8 = arith.constant dense<0.000000e+00> : vector<32x32xf32>
    %8 = tpu.matmul %0, %7, %cst_8 {dimension_numbers = #tpu.dot_dimension_numbers<[1], [0], [0], [1], [0, 0, 1, 1], [], []>} : vector<32x16xbf16>, vector<16x32xbf16>, vector<32x32xf32> -> vector<32x32xf32>
    %9 = arith.truncf %8 : vector<32x32xf32> to vector<32x32xbf16>
    %c32 = arith.constant 32 : index
    %c0_9 = arith.constant 0 : index
    %10 = vector.load %arg6[%c32, %c0_9] : memref<64x32xbf16, #tpu.memory_space<vmem>>, vector<32x32xbf16>
    tpu.vector_store %arg6[%c32, %c0_9], %9 {strides = array<i32>} : memref<64x32xbf16, #tpu.memory_space<vmem>>, vector<32x32xbf16>,
    %c0_10 = arith.constant 0 : index
    %c0_11 = arith.constant 0 : index
    %11 = vector.load %arg6[%c0_10, %c0_11] : memref<64x32xbf16, #tpu.memory_space<vmem>>, vector<64x32xbf16>
    %c0_12 = arith.constant 0 : index
    %c0_13 = arith.constant 0 : index
    %12 = vector.load %arg3[%c0_12, %c0_13] : memref<64x64xf32, #tpu.memory_space<vmem>>, vector<64x64xf32>
    %cst_14 = arith.constant dense<0.000000e+00> : vector<64x64xf32>
    %13 = tpu.matmul %11, %11, %cst_14 {dimension_numbers = #tpu.dot_dimension_numbers<[1], [1], [0], [0], [0, 0, 1, 0], [], []>} : vector<64x32xbf16>, vector<64x32xbf16>, vector<64x64xf32> -> vector<64x64xf32>
    %cst_15 = arith.constant 0.000000e+00 : f32
    %14 = vector.broadcast %cst_15 : f32 to vector<64x64xf32>
    %15 = arith.cmpf one, %13, %14 : vector<64x64xf32>
    %cst_16 = arith.constant 1.000000e-01 : f32
    %16 = vector.broadcast %cst_16 : f32 to vector<64x64xf32>
    %17 = arith.mulf %16, %13 : vector<64x64xf32>
    %18 = arith.maximumf %13, %17 : vector<64x64xf32>
    %19 = arith.addf %18, %12 : vector<64x64xf32>
    %cst_17 = arith.constant -1.000000e+16 : f32
    %20 = vector.broadcast %cst_17 : f32 to vector<64x64xf32>
    %21 = arith.select %15, %19, %20 : vector<64x64xi1>, vector<64x64xf32>
    %cst_18 = arith.constant dense<0xFF800000> : vector<64xf32>
    %22 = vector.multi_reduction <maximumf>, %21, %cst_18 [1] : vector<64x64xf32> to vector<64xf32>
    %23 = vector.shape_cast %22 : vector<64xf32> to vector<64x1xf32>
    %24 = vector.broadcast %23 : vector<64x1xf32> to vector<64x64xf32>
    %25 = arith.subf %21, %24 : vector<64x64xf32>
    %26 = math.exp %25 : vector<64x64xf32>
    %cst_19 = arith.constant dense<0.000000e+00> : vector<64xf32>
    %27 = vector.multi_reduction <add>, %26, %cst_19 [1] : vector<64x64xf32> to vector<64xf32>
    %28 = vector.shape_cast %27 : vector<64xf32> to vector<64x1xf32>
    %29 = tpu.reciprocal %28 {approx = true} : vector<64x1xf32> -> vector<64x1xf32>
    %30 = vector.broadcast %29 : vector<64x1xf32> to vector<64x64xf32>
    %31 = arith.mulf %26, %30 : vector<64x64xf32>
    %32 = arith.truncf %31 : vector<64x64xf32> to vector<64x64xbf16>
    %cst_20 = arith.constant dense<0.000000e+00> : vector<64x32xf32>
    %33 = tpu.matmul %32, %11, %cst_20 {dimension_numbers = #tpu.dot_dimension_numbers<[1], [0], [0], [1], [0, 0, 1, 1], [], []>} : vector<64x64xbf16>, vector<64x32xbf16>, vector<64x32xf32> -> vector<64x32xf32>
    %cst_21 = arith.constant 0.000000e+00 : f32
    %34 = vector.broadcast %cst_21 : f32 to vector<64x32xf32>
    %35 = arith.cmpf ogt, %33, %34 : vector<64x32xf32>
    %36 = math.exp %33 : vector<64x32xf32>
    %cst_22 = arith.constant 1.000000e+00 : f32
    %37 = vector.broadcast %cst_22 : f32 to vector<64x32xf32>
    %38 = arith.subf %36, %37 : vector<64x32xf32>
    %39 = arith.select %35, %33, %38 : vector<64x32xi1>, vector<64x32xf32>
    %40 = arith.truncf %39 : vector<64x32xf32> to vector<64x32xbf16>
    %41 = vector.extract_strided_slice %40 {offsets = [0, 0], sizes = [32, 32], strides = [1, 1]} : vector<64x32xbf16> to vector<32x32xbf16>
    %c0_23 = arith.constant 0 : index
    %c0_24 = arith.constant 0 : index
    %c0_25 = arith.constant 0 : index
    %42 = vector.load %arg2[%c0_23, %c0_24, %c0_25] : memref<2x32x8xbf16, #tpu.memory_space<vmem>>, vector<1x32x8xbf16>
    %43 = vector.shape_cast %42 : vector<1x32x8xbf16> to vector<32x8xbf16>
    %cst_26 = arith.constant dense<0.000000e+00> : vector<32x8xf32>
    %44 = tpu.matmul %41, %43, %cst_26 {dimension_numbers = #tpu.dot_dimension_numbers<[1], [0], [0], [1], [0, 0, 1, 1], [], []>} : vector<32x32xbf16>, vector<32x8xbf16>, vector<32x8xf32> -> vector<32x8xf32>
    %45 = vector.extract_strided_slice %40 {offsets = [32, 0], sizes = [32, 32], strides = [1, 1]} : vector<64x32xbf16> to vector<32x32xbf16>
    %c1_27 = arith.constant 1 : index
    %c0_28 = arith.constant 0 : index
    %c0_29 = arith.constant 0 : index
    %46 = vector.load %arg2[%c1_27, %c0_28, %c0_29] : memref<2x32x8xbf16, #tpu.memory_space<vmem>>, vector<1x32x8xbf16>
    %47 = vector.shape_cast %46 : vector<1x32x8xbf16> to vector<32x8xbf16>
    %cst_30 = arith.constant dense<0.000000e+00> : vector<32x8xf32>
    %48 = tpu.matmul %45, %47, %cst_30 {dimension_numbers = #tpu.dot_dimension_numbers<[1], [0], [0], [1], [0, 0, 1, 1], [], []>} : vector<32x32xbf16>, vector<32x8xbf16>, vector<32x8xf32> -> vector<32x8xf32>
    %49 = arith.addf %44, %48 : vector<32x8xf32>
    %50 = arith.truncf %49 : vector<32x8xf32> to vector<32x8xbf16>
    %c0_31 = arith.constant 0 : index
    %c0_32 = arith.constant 0 : index
    %51 = vector.load %arg4[%c0_31, %c0_32] : memref<32x32xf32, #tpu.memory_space<vmem>>, vector<32x32xf32>
    %cst_33 = arith.constant dense<0.000000e+00> : vector<32x32xf32>
    %52 = tpu.matmul %50, %50, %cst_33 {dimension_numbers = #tpu.dot_dimension_numbers<[1], [1], [0], [0], [0, 0, 1, 0], [], []>} : vector<32x8xbf16>, vector<32x8xbf16>, vector<32x32xf32> -> vector<32x32xf32>
    %cst_34 = arith.constant 0.000000e+00 : f32
    %53 = vector.broadcast %cst_34 : f32 to vector<32x32xf32>
    %54 = arith.cmpf one, %52, %53 : vector<32x32xf32>
    %cst_35 = arith.constant 1.000000e-01 : f32
    %55 = vector.broadcast %cst_35 : f32 to vector<32x32xf32>
    %56 = arith.mulf %55, %52 : vector<32x32xf32>
    %57 = arith.maximumf %52, %56 : vector<32x32xf32>
    %58 = arith.addf %57, %51 : vector<32x32xf32>
    %cst_36 = arith.constant -1.000000e+16 : f32
    %59 = vector.broadcast %cst_36 : f32 to vector<32x32xf32>
    %60 = arith.select %54, %58, %59 : vector<32x32xi1>, vector<32x32xf32>
    %cst_37 = arith.constant dense<0xFF800000> : vector<32xf32>
    %61 = vector.multi_reduction <maximumf>, %60, %cst_37 [1] : vector<32x32xf32> to vector<32xf32>
    %62 = vector.shape_cast %61 : vector<32xf32> to vector<32x1xf32>
    %63 = vector.broadcast %62 : vector<32x1xf32> to vector<32x32xf32>
    %64 = arith.subf %60, %63 : vector<32x32xf32>
    %65 = math.exp %64 : vector<32x32xf32>
    %cst_38 = arith.constant dense<0.000000e+00> : vector<32xf32>
    %66 = vector.multi_reduction <add>, %65, %cst_38 [1] : vector<32x32xf32> to vector<32xf32>
    %67 = vector.shape_cast %66 : vector<32xf32> to vector<32x1xf32>
    %68 = tpu.reciprocal %67 {approx = true} : vector<32x1xf32> -> vector<32x1xf32>
    %69 = vector.broadcast %68 : vector<32x1xf32> to vector<32x32xf32>
    %70 = arith.mulf %65, %69 : vector<32x32xf32>
    %71 = arith.truncf %70 : vector<32x32xf32> to vector<32x32xbf16>
    %cst_39 = arith.constant dense<0.000000e+00> : vector<32x8xf32>
    %72 = tpu.matmul %71, %50, %cst_39 {dimension_numbers = #tpu.dot_dimension_numbers<[1], [0], [0], [1], [0, 0, 1, 1], [], []>} : vector<32x32xbf16>, vector<32x8xbf16>, vector<32x8xf32> -> vector<32x8xf32>
    %c0_40 = arith.constant 0 : index
    %c0_41 = arith.constant 0 : index
    %73 = vector.load %arg5[%c0_40, %c0_41] : memref<32x8xf32, #tpu.memory_space<vmem>>, vector<32x8xf32>
    tpu.vector_store %arg5[%c0_40, %c0_41], %72 {strides = array<i32>} : memref<32x8xf32, #tpu.memory_space<vmem>>, vector<32x8xf32>,
    return
  }
}

</mosaic_0001>

<llo_original>
// kernel: gat_forward.1
$region0: #{gat_forward.1}
  #allocation0 [shape = 'u32[]', space=smem, size = 0x4, offset = 0x4, fixed_abs, tag = 'smem constant byte address 0x4 - core index']
  #allocation1 [shape = 'u32[144,128]{1,0:T(1,128)}', space=vmem, size = 0x12000, scoped, tag = 'internal scratch']
  #allocation2 [shape = 'bf16[64,32]{1,0:T(8,128)(2,1)}', space=vmem, size = 0x4000, scoped, tag = 'scratch operand']
  %s0 = inlined_call_operand.vmem [shape: bf16[32,16], index: 0, kind: input, shape index: {}]
  %s1 = inlined_call_operand.vmem [shape: bf16[2,16,32], index: 1, kind: input, shape index: {}]
  %s2 = inlined_call_operand.vmem [shape: bf16[2,32,8], index: 2, kind: input, shape index: {}]
  %s3 = inlined_call_operand.vmem [shape: f32[64,64], index: 3, kind: input, shape index: {}]
  %s4 = inlined_call_operand.vmem [shape: f32[32,32], index: 4, kind: input, shape index: {}]
  %s5 = inlined_call_operand.vmem [shape: f32[32,8], index: 5, kind: output, shape index: {}]
  %s6 = sld [smem:[#allocation0]]
  $region30: #{gat_forward.1} parent=0
    _
  %s8 = ssub.s32 1, %s6
  %s9 = scalar_select 0, %s8, %s6
  // Predicated region
  $region2: #{gat_forward.1} parent=0 // pred_check
    _
  $region3: #{gat_forward.1} parent=0 // pred_check_branch
    %11 = sbr.rel (0) target = $region5
  $region4: #{gat_forward.1} parent=0 // pred_region
    _
  $region5: #{gat_forward.1} parent=0 // pred_fallthru
    _
  // Predicated region
  $region6: #{gat_forward.1} parent=0 // pred_check
    _
  $region7: #{gat_forward.1} parent=0 // pred_check_branch
    %13 = sbr.rel (0) target = $region9
  $region8: #{gat_forward.1} parent=0 // pred_region
    _
  $region9: #{gat_forward.1} parent=0 // pred_fallthru
    _
  // Predicated region
  $region10: #{gat_forward.1} parent=0 // pred_check
    _
  $region11: #{gat_forward.1} parent=0 // pred_check_branch
    %15 = sbr.rel (0) target = $region13
  $region12: #{gat_forward.1} parent=0 // pred_region
    _
  $region13: #{gat_forward.1} parent=0 // pred_fallthru
    _
  // Predicated region
  $region14: #{gat_forward.1} parent=0 // pred_check
    _
  $region15: #{gat_forward.1} parent=0 // pred_check_branch
    %17 = sbr.rel (0) target = $region17
  $region16: #{gat_forward.1} parent=0 // pred_region
    _
  $region17: #{gat_forward.1} parent=0 // pred_fallthru
    _
  // Predicated region
  $region18: #{gat_forward.1} parent=0 // pred_check
    _
  $region19: #{gat_forward.1} parent=0 // pred_check_branch
    %19 = sbr.rel (0) target = $region21
  $region20: #{gat_forward.1} parent=0 // pred_region
    _
  $region21: #{gat_forward.1} parent=0 // pred_fallthru
    _
  %v21 = vld [vmem:[%s0] sm:$0xf]
  %v22 = vld [vmem:[%s0 + $0x4] sm:$0xf]
  %v23 = vld [vmem:[%s0 + $0x8] sm:$0xf]
  %v24 = vld [vmem:[%s0 + $0xc] sm:$0xf]
  %v25 = vld [vmem:[%s1] sm:$0xf]
  %v26 = vld [vmem:[%s1 + $0x4] sm:$0xf]
  %v31 = vunpack.c.l.b16 %v21
  %v32 = vunpack.c.l.b16 %v22
  %v33 = vunpack.c.l.b16 %v23
  %v34 = vunpack.c.l.b16 %v24
  %v35 = vpack.c.b16 %v32, %v31
  %v36 = vpack.c.b16 %v34, %v33
  %v39 = vunpack.c.l.b16 %v25
  %v40 = vunpack.c.l.b16 %v26
  %v41 = vpack.c.b16 %v40, %v39
  %vm43 = vcmask 130048
  %v45 = vsel %vm43, %v35, 0
  %v48 = vsel %vm43, %v36, 0
  %50 = vmatprep.subr.bf16.mxu0 0
  %51 = vmatpush1.bf16.msra.mxu0 0
  %52 = vmatprep.subr.bf16.mxu0 0
  %53 = vmatpush1.bf16.msra.mxu0 0
  %54 = vmatprep.subr.bf16.mxu0 0
  %55 = vmatpush1.bf16.msra.mxu0 0
  %56 = vmatprep.subr.bf16.mxu0 0
  %57 = vmatpush1.bf16.msra.mxu0 0
  %58 = vmatprep.subr.bf16.mxu0 0
  %59 = vmatpush1.bf16.msra.mxu0 0
  %60 = vmatprep.subr.bf16.mxu0 0
  %61 = vmatpush1.bf16.msra.mxu0 0
  %62 = vmatprep.subr.bf16.mxu0 0
  %63 = vmatpush1.bf16.msra.mxu0 0
  %64 = vmatprep.subr.bf16.mxu0 0
  %65 = vmatpush1.bf16.msra.mxu0 %v41
  %66 = vmatprep.subr.bf16.mxu0 0
  %67 = vmatpush2.bf16.msra.mxu0 0
  %68 = vmatprep.subr.bf16.mxu0 0
  %69 = vmatpush2.bf16.msra.mxu0 0
  %70 = vmatprep.subr.bf16.mxu0 0
  %71 = vmatpush2.bf16.msra.mxu0 0
  %72 = vmatprep.subr.bf16.mxu0 0
  %73 = vmatpush2.bf16.msra.mxu0 0
  %74 = vmatprep.subr.bf16.mxu0 0
  %75 = vmatpush2.bf16.msra.mxu0 0
  %76 = vmatprep.subr.bf16.mxu0 0
  %77 = vmatpush2.bf16.msra.mxu0 0
  %78 = vmatprep.subr.bf16.mxu0 0
  %79 = vmatpush2.bf16.msra.mxu0 0
  %80 = vmatprep.subr.bf16.mxu0 0
  %81 = vmatpush2.bf16.msra.mxu0 0
  %82 = vmatprep.mubr.bf16.mxu0 0
  %83 = vmatmul.mubr.bf16.gmra.mxu0 %v45
  %v84 = vpop.f32.mrf.mxu0
  %v85 = vadd.f32 0.0, %v84
  %v86 = vpop.f32.mrf.mxu0
  %v87 = vpop.f32.mrf.mxu0
  %v88 = vadd.f32 0.0, %v87
  %v89 = vpop.f32.mrf.mxu0
  %90 = vmatprep.mubr.bf16.mxu0 0
  %91 = vmatmul.mubr.bf16.gmra.mxu0 %v48
  %v92 = vpop.f32.mrf.mxu0
  %v93 = vadd.f32 0.0, %v92
  %v94 = vpop.f32.mrf.mxu0
  %v95 = vpop.f32.mrf.mxu0
  %v96 = vadd.f32 0.0, %v95
  %v97 = vpop.f32.mrf.mxu0
  %98 = vdwg.mxu0
  %v99 = vpack.c.bf16 %v88, %v85
  %v100 = vpack.c.bf16 %v96, %v93
  %v103 = vunpack.c.l.b16 %v99
  %v104 = vunpack.c.h.b16 %v99
  %v105 = vunpack.c.l.b16 %v100
  %v106 = vunpack.c.h.b16 %v100
  %v107 = vpack.c.b16 %v103, %v103
  %v108 = vpack.c.b16 %v104, %v104
  %v109 = vpack.c.b16 %v105, %v105
  %v110 = vpack.c.b16 %v106, %v106
  %vm115 = vcmask 257024
  %116 = vst.msk [vmem:[#allocation2] sm:$0xf] %vm115, %v107
  %117 = vst.msk [vmem:[#allocation2 + $0x4] sm:$0xf] %vm115, %v108
  %118 = vst.msk [vmem:[#allocation2 + $0x8] sm:$0xf] %vm115, %v109
  %119 = vst.msk [vmem:[#allocation2 + $0xc] sm:$0xf] %vm115, %v110
  %s120 = scalar_lea.vmem %s1, 8
  %v121 = vld [vmem:[%s120] sm:$0xf]
  %v122 = vld [vmem:[%s120 + $0x4] sm:$0xf]
  %v125 = vunpack.c.l.b16 %v121
  %v126 = vunpack.c.l.b16 %v122
  %v127 = vpack.c.b16 %v126, %v125
  %129 = vmatprep.subr.bf16.mxu0 0
  %130 = vmatpush1.bf16.msra.mxu0 0
  %131 = vmatprep.subr.bf16.mxu0 0
  %132 = vmatpush1.bf16.msra.mxu0 0
  %133 = vmatprep.subr.bf16.mxu0 0
  %134 = vmatpush1.bf16.msra.mxu0 0
  %135 = vmatprep.subr.bf16.mxu0 0
  %136 = vmatpush1.bf16.msra.mxu0 0
  %137 = vmatprep.subr.bf16.mxu0 0
  %138 = vmatpush1.bf16.msra.mxu0 0
  %139 = vmatprep.subr.bf16.mxu0 0
  %140 = vmatpush1.bf16.msra.mxu0 0
  %141 = vmatprep.subr.bf16.mxu0 0
  %142 = vmatpush1.bf16.msra.mxu0 0
  %143 = vmatprep.subr.bf16.mxu0 0
  %144 = vmatpush1.bf16.msra.mxu0 %v127
  %145 = vmatprep.subr.bf16.mxu0 0
  %146 = vmatpush2.bf16.msra.mxu0 0
  %147 = vmatprep.subr.bf16.mxu0 0
  %148 = vmatpush2.bf16.msra.mxu0 0
  %149 = vmatprep.subr.bf16.mxu0 0
  %150 = vmatpush2.bf16.msra.mxu0 0
  %151 = vmatprep.subr.bf16.mxu0 0
  %152 = vmatpush2.bf16.msra.mxu0 0
  %153 = vmatprep.subr.bf16.mxu0 0
  %154 = vmatpush2.bf16.msra.mxu0 0
  %155 = vmatprep.subr.bf16.mxu0 0
  %156 = vmatpush2.bf16.msra.mxu0 0
  %157 = vmatprep.subr.bf16.mxu0 0
  %158 = vmatpush2.bf16.msra.mxu0 0
  %159 = vmatprep.subr.bf16.mxu0 0
  %160 = vmatpush2.bf16.msra.mxu0 0
  %161 = vmatprep.mubr.bf16.mxu0 0
  %162 = vmatmul.mubr.bf16.gmra.mxu0 %v45
  %v163 = vpop.f32.mrf.mxu0
  %v164 = vadd.f32 0.0, %v163
  %v165 = vpop.f32.mrf.mxu0
  %v166 = vpop.f32.mrf.mxu0
  %v167 = vadd.f32 0.0, %v166
  %v168 = vpop.f32.mrf.mxu0
  %169 = vmatprep.mubr.bf16.mxu0 0
  %170 = vmatmul.mubr.bf16.gmra.mxu0 %v48
  %v171 = vpop.f32.mrf.mxu0
  %v172 = vadd.f32 0.0, %v171
  %v173 = vpop.f32.mrf.mxu0
  %v174 = vpop.f32.mrf.mxu0
  %v175 = vadd.f32 0.0, %v174
  %v176 = vpop.f32.mrf.mxu0
  %177 = vdwg.mxu0
  %v178 = vpack.c.bf16 %v167, %v164
  %v179 = vpack.c.bf16 %v175, %v172
  %v182 = vunpack.c.l.b16 %v178
  %v183 = vunpack.c.h.b16 %v178
  %v184 = vunpack.c.l.b16 %v179
  %v185 = vunpack.c.h.b16 %v179
  %v186 = vpack.c.b16 %v182, %v182
  %v187 = vpack.c.b16 %v183, %v183
  %v188 = vpack.c.b16 %v184, %v184
  %v189 = vpack.c.b16 %v185, %v185
  %194 = vst.msk [vmem:[#allocation2 + $0x10] sm:$0xf] %vm115, %v186
  %195 = vst.msk [vmem:[#allocation2 + $0x14] sm:$0xf] %vm115, %v187
  %196 = vst.msk [vmem:[#allocation2 + $0x18] sm:$0xf] %vm115, %v188
  %197 = vst.msk [vmem:[#allocation2 + $0x1c] sm:$0xf] %vm115, %v189
  %v198 = vld [vmem:[#allocation2] sm:$0xf]
  %v199 = vld [vmem:[#allocation2 + $0x4] sm:$0xf]
  %v200 = vld [vmem:[#allocation2 + $0x8] sm:$0xf]
  %v201 = vld [vmem:[#allocation2 + $0xc] sm:$0xf]
  %v202 = vld [vmem:[#allocation2 + $0x10] sm:$0xf]
  %v203 = vld [vmem:[#allocation2 + $0x14] sm:$0xf]
  %v204 = vld [vmem:[#allocation2 + $0x18] sm:$0xf]
  %v205 = vld [vmem:[#allocation2 + $0x1c] sm:$0xf]
  %v206 = vld [vmem:[%s3] sm:$0xff]
  %v207 = vld [vmem:[%s3 + $0x8] sm:$0xff]
  %v208 = vld [vmem:[%s3 + $0x10] sm:$0xff]
  %v209 = vld [vmem:[%s3 + $0x18] sm:$0xff]
  %v210 = vld [vmem:[%s3 + $0x20] sm:$0xff]
  %v211 = vld [vmem:[%s3 + $0x28] sm:$0xff]
  %v212 = vld [vmem:[%s3 + $0x30] sm:$0xff]
  %v213 = vld [vmem:[%s3 + $0x38] sm:$0xff]
  %v222 = vunpack.c.l.b16 %v198
  %v223 = vunpack.c.l.b16 %v199
  %v224 = vunpack.c.l.b16 %v200
  %v225 = vunpack.c.l.b16 %v201
  %v226 = vunpack.c.l.b16 %v202
  %v227 = vunpack.c.l.b16 %v203
  %v228 = vunpack.c.l.b16 %v204
  %v229 = vunpack.c.l.b16 %v205
  %v230 = vpack.c.b16 %v223, %v222
  %v231 = vpack.c.b16 %v225, %v224
  %v232 = vpack.c.b16 %v227, %v226
  %v233 = vpack.c.b16 %v229, %v228
  %vm234 = vcmask 261120
  %v236 = vsel %vm234, %v230, 0
  %v239 = vsel %vm234, %v231, 0
  %v242 = vsel %vm234, %v232, 0
  %v245 = vsel %vm234, %v233, 0
  %247 = vmatprep.subr.bf16.mxu0 0
  %248 = vmatpush1.bf16.xpose.msra.mxu0 0
  %249 = vmatprep.subr.bf16.mxu0 0
  %250 = vmatpush1.bf16.xpose.msra.mxu0 0
  %251 = vmatprep.subr.bf16.mxu0 0
  %252 = vmatpush1.bf16.xpose.msra.mxu0 0
  %253 = vmatprep.subr.bf16.mxu0 0
  %254 = vmatpush1.bf16.xpose.msra.mxu0 0
  %255 = vmatprep.subr.bf16.mxu0 0
  %256 = vmatpush1.bf16.xpose.msra.mxu0 %v245
  %257 = vmatprep.subr.bf16.mxu0 0
  %258 = vmatpush1.bf16.xpose.msra.mxu0 %v242
  %259 = vmatprep.subr.bf16.mxu0 0
  %260 = vmatpush1.bf16.xpose.msra.mxu0 %v239
  %261 = vmatprep.subr.bf16.mxu0 0
  %262 = vmatpush1.bf16.xpose.msra.mxu0 %v236
  %263 = vmatprep.subr.bf16.mxu0 0
  %264 = vmatpush2.bf16.xpose.msra.mxu0 0
  %265 = vmatprep.subr.bf16.mxu0 0
  %266 = vmatpush2.bf16.xpose.msra.mxu0 0
  %267 = vmatprep.subr.bf16.mxu0 0
  %268 = vmatpush2.bf16.xpose.msra.mxu0 0
  %269 = vmatprep.subr.bf16.mxu0 0
  %270 = vmatpush2.bf16.xpose.msra.mxu0 0
  %271 = vmatprep.subr.bf16.mxu0 0
  %272 = vmatpush2.bf16.xpose.msra.mxu0 0
  %273 = vmatprep.subr.bf16.mxu0 0
  %274 = vmatpush2.bf16.xpose.msra.mxu0 0
  %275 = vmatprep.subr.bf16.mxu0 0
  %276 = vmatpush2.bf16.xpose.msra.mxu0 0
  %277 = vmatprep.subr.bf16.mxu0 0
  %278 = vmatpush2.bf16.xpose.msra.mxu0 0
  %279 = vmatprep.mubr.bf16.mxu0 0
  %280 = vmatmul.mubr.bf16.gmra.mxu0 %v236
  %v281 = vpop.f32.mrf.mxu0
  %v282 = vadd.f32 0.0, %v281
  %v283 = vpop.f32.mrf.mxu0
  %v284 = vpop.f32.mrf.mxu0
  %v285 = vadd.f32 0.0, %v284
  %v286 = vpop.f32.mrf.mxu0
  %287 = vmatprep.mubr.bf16.mxu0 0
  %288 = vmatmul.mubr.bf16.gmra.mxu0 %v239
  %v289 = vpop.f32.mrf.mxu0
  %v290 = vadd.f32 0.0, %v289
  %v291 = vpop.f32.mrf.mxu0
  %v292 = vpop.f32.mrf.mxu0
  %v293 = vadd.f32 0.0, %v292
  %v294 = vpop.f32.mrf.mxu0
  %295 = vmatprep.mubr.bf16.mxu0 0
  %296 = vmatmul.mubr.bf16.gmra.mxu0 %v242
  %v297 = vpop.f32.mrf.mxu0
  %v298 = vadd.f32 0.0, %v297
  %v299 = vpop.f32.mrf.mxu0
  %v300 = vpop.f32.mrf.mxu0
  %v301 = vadd.f32 0.0, %v300
  %v302 = vpop.f32.mrf.mxu0
  %303 = vmatprep.mubr.bf16.mxu0 0
  %304 = vmatmul.mubr.bf16.gmra.mxu0 %v245
  %v305 = vpop.f32.mrf.mxu0
  %v306 = vadd.f32 0.0, %v305
  %v307 = vpop.f32.mrf.mxu0
  %v308 = vpop.f32.mrf.mxu0
  %v309 = vadd.f32 0.0, %v308
  %v310 = vpop.f32.mrf.mxu0
  %311 = vdwg.mxu0
  %vm312 = vcmp.ne.f32.partialorder %v282, 0.0
  %vm313 = vcmp.ne.f32.partialorder %v285, 0.0
  %vm314 = vcmp.ne.f32.partialorder %v290, 0.0
  %vm315 = vcmp.ne.f32.partialorder %v293, 0.0
  %vm316 = vcmp.ne.f32.partialorder %v298, 0.0
  %vm317 = vcmp.ne.f32.partialorder %v301, 0.0
  %vm318 = vcmp.ne.f32.partialorder %v306, 0.0
  %vm319 = vcmp.ne.f32.partialorder %v309, 0.0
  %v320 = vmul.f32 %v282, 0.1
  %v321 = vmul.f32 %v285, 0.1
  %v322 = vmul.f32 %v290, 0.1
  %v323 = vmul.f32 %v293, 0.1
  %v324 = vmul.f32 %v298, 0.1
  %v325 = vmul.f32 %v301, 0.1
  %v326 = vmul.f32 %v306, 0.1
  %v327 = vmul.f32 %v309, 0.1
  %v328 = vmax.f32 %v282, %v320
  %v329 = vmax.f32 %v285, %v321
  %v330 = vmax.f32 %v290, %v322
  %v331 = vmax.f32 %v293, %v323
  %v332 = vmax.f32 %v298, %v324
  %v333 = vmax.f32 %v301, %v325
  %v334 = vmax.f32 %v306, %v326
  %v335 = vmax.f32 %v309, %v327
  %v336 = vadd.f32 %v328, %v206
  %v337 = vadd.f32 %v329, %v207
  %v338 = vadd.f32 %v330, %v208
  %v339 = vadd.f32 %v331, %v209
  %v340 = vadd.f32 %v332, %v210
  %v341 = vadd.f32 %v333, %v211
  %v342 = vadd.f32 %v334, %v212
  %v343 = vadd.f32 %v335, %v213
  %v344 = vsel %vm312, %v336, -1e+16
  %v345 = vsel %vm313, %v337, -1e+16
  %v346 = vsel %vm314, %v338, -1e+16
  %v347 = vsel %vm315, %v339, -1e+16
  %v348 = vsel %vm316, %v340, -1e+16
  %v349 = vsel %vm317, %v341, -1e+16
  %v350 = vsel %vm318, %v342, -1e+16
  %v351 = vsel %vm319, %v343, -1e+16
  %vm352 = vcmask 523264
  %v353 = vsel %vm352, %v344, -inf
  %354 = vmax.xlane.f32.xlu0 %v353
  %v355 = vpop.xlane.xlu0 %354
  %v356 = vsel %vm352, %v345, -inf
  %357 = vmax.xlane.f32.xlu0 %v356
  %v358 = vpop.xlane.xlu0 %357
  %v359 = vsel %vm352, %v346, -inf
  %360 = vmax.xlane.f32.xlu0 %v359
  %v361 = vpop.xlane.xlu0 %360
  %v362 = vsel %vm352, %v347, -inf
  %363 = vmax.xlane.f32.xlu0 %v362
  %v364 = vpop.xlane.xlu0 %363
  %v365 = vsel %vm352, %v348, -inf
  %366 = vmax.xlane.f32.xlu0 %v365
  %v367 = vpop.xlane.xlu0 %366
  %v368 = vsel %vm352, %v349, -inf
  %369 = vmax.xlane.f32.xlu0 %v368
  %v370 = vpop.xlane.xlu0 %369
  %v371 = vsel %vm352, %v350, -inf
  %372 = vmax.xlane.f32.xlu0 %v371
  %v373 = vpop.xlane.xlu0 %372
  %v374 = vsel %vm352, %v351, -inf
  %375 = vmax.xlane.f32.xlu0 %v374
  %v376 = vpop.xlane.xlu0 %375
  %v377 = vsub.f32 %v344, %v355
  %v378 = vsub.f32 %v345, %v358
  %v379 = vsub.f32 %v346, %v361
  %v380 = vsub.f32 %v347, %v364
  %v381 = vsub.f32 %v348, %v367
  %v382 = vsub.f32 %v349, %v370
  %v383 = vsub.f32 %v350, %v373
  %v384 = vsub.f32 %v351, %v376
  %v385 = vmul.f32 %v377, 1.442695
  %v386 = vpow.pop %v385
  %v387 = vmul.f32 %v378, 1.442695
  %v388 = vpow.pop %v387
  %v389 = vmul.f32 %v379, 1.442695
  %v390 = vpow.pop %v389
  %v391 = vmul.f32 %v380, 1.442695
  %v392 = vpow.pop %v391
  %v393 = vmul.f32 %v381, 1.442695
  %v394 = vpow.pop %v393
  %v395 = vmul.f32 %v382, 1.442695
  %v396 = vpow.pop %v395
  %v397 = vmul.f32 %v383, 1.442695
  %v398 = vpow.pop %v397
  %v399 = vmul.f32 %v384, 1.442695
  %v400 = vpow.pop %v399
  %v401 = vsel %vm352, %v386, 0.0
  %402 = vadd.xlane.f32.xlu0 %v401
  %v403 = vpop.xlane.xlu0 %402
  %v404 = vsel %vm352, %v388, 0.0
  %405 = vadd.xlane.f32.xlu0 %v404
  %v406 = vpop.xlane.xlu0 %405
  %v407 = vsel %vm352, %v390, 0.0
  %408 = vadd.xlane.f32.xlu0 %v407
  %v409 = vpop.xlane.xlu0 %408
  %v410 = vsel %vm352, %v392, 0.0
  %411 = vadd.xlane.f32.xlu0 %v410
  %v412 = vpop.xlane.xlu0 %411
  %v413 = vsel %vm352, %v394, 0.0
  %414 = vadd.xlane.f32.xlu0 %v413
  %v415 = vpop.xlane.xlu0 %414
  %v416 = vsel %vm352, %v396, 0.0
  %417 = vadd.xlane.f32.xlu0 %v416
  %v418 = vpop.xlane.xlu0 %417
  %v419 = vsel %vm352, %v398, 0.0
  %420 = vadd.xlane.f32.xlu0 %v419
  %v421 = vpop.xlane.xlu0 %420
  %v422 = vsel %vm352, %v400, 0.0
  %423 = vadd.xlane.f32.xlu0 %v422
  %v424 = vpop.xlane.xlu0 %423
  %v425 = vrcp.pop %v403
  %v426 = vrcp.pop %v406
  %v427 = vrcp.pop %v409
  %v428 = vrcp.pop %v412
  %v429 = vrcp.pop %v415
  %v430 = vrcp.pop %v418
  %v431 = vrcp.pop %v421
  %v432 = vrcp.pop %v424
  %v433 = vmul.f32 %v386, %v425
  %v434 = vmul.f32 %v388, %v426
  %v435 = vmul.f32 %v390, %v427
  %v436 = vmul.f32 %v392, %v428
  %v437 = vmul.f32 %v394, %v429
  %v438 = vmul.f32 %v396, %v430
  %v439 = vmul.f32 %v398, %v431
  %v440 = vmul.f32 %v400, %v432
  %v441 = vpack.c.bf16 %v434, %v433
  %v442 = vpack.c.bf16 %v436, %v435
  %v443 = vpack.c.bf16 %v438, %v437
  %v444 = vpack.c.bf16 %v440, %v439
  %v450 = vsel %vm352, %v441, 0
  %v453 = vsel %vm352, %v442, 0
  %v456 = vsel %vm352, %v443, 0
  %v459 = vsel %vm352, %v444, 0
  %461 = vmatprep.subr.bf16.mxu0 0
  %462 = vmatpush1.bf16.msra.mxu0 0
  %463 = vmatprep.subr.bf16.mxu0 0
  %464 = vmatpush1.bf16.msra.mxu0 0
  %465 = vmatprep.subr.bf16.mxu0 0
  %466 = vmatpush1.bf16.msra.mxu0 0
  %467 = vmatprep.subr.bf16.mxu0 0
  %468 = vmatpush1.bf16.msra.mxu0 0
  %469 = vmatprep.subr.bf16.mxu0 0
  %470 = vmatpush1.bf16.msra.mxu0 %v233
  %471 = vmatprep.subr.bf16.mxu0 0
  %472 = vmatpush1.bf16.msra.mxu0 %v232
  %473 = vmatprep.subr.bf16.mxu0 0
  %474 = vmatpush1.bf16.msra.mxu0 %v231
  %475 = vmatprep.subr.bf16.mxu0 0
  %476 = vmatpush1.bf16.msra.mxu0 %v230
  %477 = vmatprep.subr.bf16.mxu0 0
  %478 = vmatpush2.bf16.msra.mxu0 0
  %479 = vmatprep.subr.bf16.mxu0 0
  %480 = vmatpush2.bf16.msra.mxu0 0
  %481 = vmatprep.subr.bf16.mxu0 0
  %482 = vmatpush2.bf16.msra.mxu0 0
  %483 = vmatprep.subr.bf16.mxu0 0
  %484 = vmatpush2.bf16.msra.mxu0 0
  %485 = vmatprep.subr.bf16.mxu0 0
  %486 = vmatpush2.bf16.msra.mxu0 0
  %487 = vmatprep.subr.bf16.mxu0 0
  %488 = vmatpush2.bf16.msra.mxu0 0
  %489 = vmatprep.subr.bf16.mxu0 0
  %490 = vmatpush2.bf16.msra.mxu0 0
  %491 = vmatprep.subr.bf16.mxu0 0
  %492 = vmatpush2.bf16.msra.mxu0 0
  %493 = vmatprep.mubr.bf16.mxu0 0
  %494 = vmatmul.mubr.bf16.gmra.mxu0 %v450
  %v495 = vpop.f32.mrf.mxu0
  %v496 = vadd.f32 0.0, %v495
  %v497 = vpop.f32.mrf.mxu0
  %v498 = vpop.f32.mrf.mxu0
  %v499 = vadd.f32 0.0, %v498
  %v500 = vpop.f32.mrf.mxu0
  %501 = vmatprep.mubr.bf16.mxu0 0
  %502 = vmatmul.mubr.bf16.gmra.mxu0 %v453
  %v503 = vpop.f32.mrf.mxu0
  %v504 = vadd.f32 0.0, %v503
  %v505 = vpop.f32.mrf.mxu0
  %v506 = vpop.f32.mrf.mxu0
  %v507 = vadd.f32 0.0, %v506
  %v508 = vpop.f32.mrf.mxu0
  %509 = vmatprep.mubr.bf16.mxu0 0
  %510 = vmatmul.mubr.bf16.gmra.mxu0 %v456
  %v511 = vpop.f32.mrf.mxu0
  %v512 = vadd.f32 0.0, %v511
  %v513 = vpop.f32.mrf.mxu0
  %v514 = vpop.f32.mrf.mxu0
  %v515 = vadd.f32 0.0, %v514
  %v516 = vpop.f32.mrf.mxu0
  %517 = vmatprep.mubr.bf16.mxu0 0
  %518 = vmatmul.mubr.bf16.gmra.mxu0 %v459
  %v519 = vpop.f32.mrf.mxu0
  %v520 = vadd.f32 0.0, %v519
  %v521 = vpop.f32.mrf.mxu0
  %v522 = vpop.f32.mrf.mxu0
  %v523 = vadd.f32 0.0, %v522
  %v524 = vpop.f32.mrf.mxu0
  %525 = vdwg.mxu0
  %vm526 = vcmp.gt.f32.partialorder %v496, 0.0
  %vm527 = vcmp.gt.f32.partialorder %v499, 0.0
  %vm528 = vcmp.gt.f32.partialorder %v504, 0.0
  %vm529 = vcmp.gt.f32.partialorder %v507, 0.0
  %vm530 = vcmp.gt.f32.partialorder %v512, 0.0
  %vm531 = vcmp.gt.f32.partialorder %v515, 0.0
  %vm532 = vcmp.gt.f32.partialorder %v520, 0.0
  %vm533 = vcmp.gt.f32.partialorder %v523, 0.0
  %v534 = vmul.f32 %v496, 1.442695
  %v535 = vpow.pop %v534
  %v536 = vmul.f32 %v499, 1.442695
  %v537 = vpow.pop %v536
  %v538 = vmul.f32 %v504, 1.442695
  %v539 = vpow.pop %v538
  %v540 = vmul.f32 %v507, 1.442695
  %v541 = vpow.pop %v540
  %v542 = vmul.f32 %v512, 1.442695
  %v543 = vpow.pop %v542
  %v544 = vmul.f32 %v515, 1.442695
  %v545 = vpow.pop %v544
  %v546 = vmul.f32 %v520, 1.442695
  %v547 = vpow.pop %v546
  %v548 = vmul.f32 %v523, 1.442695
  %v549 = vpow.pop %v548
  %v550 = vsub.f32 %v535, 1.0
  %v551 = vsub.f32 %v537, 1.0
  %v552 = vsub.f32 %v539, 1.0
  %v553 = vsub.f32 %v541, 1.0
  %v554 = vsub.f32 %v543, 1.0
  %v555 = vsub.f32 %v545, 1.0
  %v556 = vsub.f32 %v547, 1.0
  %v557 = vsub.f32 %v549, 1.0
  %v558 = vsel %vm526, %v496, %v550
  %v559 = vsel %vm527, %v499, %v551
  %v560 = vsel %vm528, %v504, %v552
  %v561 = vsel %vm529, %v507, %v553
  %v562 = vsel %vm530, %v512, %v554
  %v563 = vsel %vm531, %v515, %v555
  %v564 = vsel %vm532, %v520, %v556
  %v565 = vsel %vm533, %v523, %v557
  %v566 = vpack.c.bf16 %v559, %v558
  %v567 = vpack.c.bf16 %v561, %v560
  %v568 = vpack.c.bf16 %v563, %v562
  %v569 = vpack.c.bf16 %v565, %v564
  %v570 = vld [vmem:[%s2] sm:$0xf]
  %v571 = vld [vmem:[%s2 + $0x4] sm:$0xf]
  %v572 = vld [vmem:[%s2 + $0x8] sm:$0xf]
  %v573 = vld [vmem:[%s2 + $0xc] sm:$0xf]
  %s574 = scalar_lea.vmem %s2, 16
  %v575 = vld [vmem:[%s574] sm:$0xf]
  %v576 = vld [vmem:[%s574 + $0x4] sm:$0xf]
  %v577 = vld [vmem:[%s574 + $0x8] sm:$0xf]
  %v578 = vld [vmem:[%s574 + $0xc] sm:$0xf]
  %v583 = vunpack.c.l.b16 %v575
  %v584 = vunpack.c.l.b16 %v576
  %v585 = vunpack.c.l.b16 %v577
  %v586 = vunpack.c.l.b16 %v578
  %v587 = vpack.c.b16 %v584, %v583
  %v588 = vpack.c.b16 %v586, %v585
  %v592 = vsel %vm234, %v568, 0
  %v595 = vsel %vm234, %v569, 0
  %597 = vmatprep.subr.bf16.mxu0 0
  %598 = vmatpush1.bf16.msra.mxu0 0
  %599 = vmatprep.subr.bf16.mxu0 0
  %600 = vmatpush1.bf16.msra.mxu0 0
  %601 = vmatprep.subr.bf16.mxu0 0
  %602 = vmatpush1.bf16.msra.mxu0 0
  %603 = vmatprep.subr.bf16.mxu0 0
  %604 = vmatpush1.bf16.msra.mxu0 0
  %605 = vmatprep.subr.bf16.mxu0 0
  %606 = vmatpush1.bf16.msra.mxu0 0
  %607 = vmatprep.subr.bf16.mxu0 0
  %608 = vmatpush1.bf16.msra.mxu0 0
  %609 = vmatprep.subr.bf16.mxu0 0
  %610 = vmatpush1.bf16.msra.mxu0 %v588
  %611 = vmatprep.subr.bf16.mxu0 0
  %612 = vmatpush1.bf16.msra.mxu0 %v587
  %613 = vmatprep.subr.bf16.mxu0 0
  %614 = vmatpush2.bf16.msra.mxu0 0
  %615 = vmatprep.subr.bf16.mxu0 0
  %616 = vmatpush2.bf16.msra.mxu0 0
  %617 = vmatprep.subr.bf16.mxu0 0
  %618 = vmatpush2.bf16.msra.mxu0 0
  %619 = vmatprep.subr.bf16.mxu0 0
  %620 = vmatpush2.bf16.msra.mxu0 0
  %621 = vmatprep.subr.bf16.mxu0 0
  %622 = vmatpush2.bf16.msra.mxu0 0
  %623 = vmatprep.subr.bf16.mxu0 0
  %624 = vmatpush2.bf16.msra.mxu0 0
  %625 = vmatprep.subr.bf16.mxu0 0
  %626 = vmatpush2.bf16.msra.mxu0 0
  %627 = vmatprep.subr.bf16.mxu0 0
  %628 = vmatpush2.bf16.msra.mxu0 0
  %629 = vmatprep.mubr.bf16.mxu0 0
  %630 = vmatmul.mubr.bf16.gmra.mxu0 %v592
  %v631 = vpop.f32.mrf.mxu0
  %v632 = vadd.f32 0.0, %v631
  %v633 = vpop.f32.mrf.mxu0
  %v634 = vpop.f32.mrf.mxu0
  %v635 = vadd.f32 0.0, %v634
  %v636 = vpop.f32.mrf.mxu0
  %637 = vmatprep.mubr.bf16.mxu0 0
  %638 = vmatmul.mubr.bf16.gmra.mxu0 %v595
  %v639 = vpop.f32.mrf.mxu0
  %v640 = vadd.f32 0.0, %v639
  %v641 = vpop.f32.mrf.mxu0
  %v642 = vpop.f32.mrf.mxu0
  %v643 = vadd.f32 0.0, %v642
  %v644 = vpop.f32.mrf.mxu0
  %645 = vdwg.mxu0
  %v650 = vunpack.c.l.b16 %v570
  %v651 = vunpack.c.l.b16 %v571
  %v652 = vunpack.c.l.b16 %v572
  %v653 = vunpack.c.l.b16 %v573
  %v654 = vpack.c.b16 %v651, %v650
  %v655 = vpack.c.b16 %v653, %v652
  %v659 = vsel %vm234, %v566, 0
  %v662 = vsel %vm234, %v567, 0
  %664 = vmatprep.subr.bf16.mxu0 0
  %665 = vmatpush1.bf16.msra.mxu0 0
  %666 = vmatprep.subr.bf16.mxu0 0
  %667 = vmatpush1.bf16.msra.mxu0 0
  %668 = vmatprep.subr.bf16.mxu0 0
  %669 = vmatpush1.bf16.msra.mxu0 0
  %670 = vmatprep.subr.bf16.mxu0 0
  %671 = vmatpush1.bf16.msra.mxu0 0
  %672 = vmatprep.subr.bf16.mxu0 0
  %673 = vmatpush1.bf16.msra.mxu0 0
  %674 = vmatprep.subr.bf16.mxu0 0
  %675 = vmatpush1.bf16.msra.mxu0 0
  %676 = vmatprep.subr.bf16.mxu0 0
  %677 = vmatpush1.bf16.msra.mxu0 %v655
  %678 = vmatprep.subr.bf16.mxu0 0
  %679 = vmatpush1.bf16.msra.mxu0 %v654
  %680 = vmatprep.subr.bf16.mxu0 0
  %681 = vmatpush2.bf16.msra.mxu0 0
  %682 = vmatprep.subr.bf16.mxu0 0
  %683 = vmatpush2.bf16.msra.mxu0 0
  %684 = vmatprep.subr.bf16.mxu0 0
  %685 = vmatpush2.bf16.msra.mxu0 0
  %686 = vmatprep.subr.bf16.mxu0 0
  %687 = vmatpush2.bf16.msra.mxu0 0
  %688 = vmatprep.subr.bf16.mxu0 0
  %689 = vmatpush2.bf16.msra.mxu0 0
  %690 = vmatprep.subr.bf16.mxu0 0
  %691 = vmatpush2.bf16.msra.mxu0 0
  %692 = vmatprep.subr.bf16.mxu0 0
  %693 = vmatpush2.bf16.msra.mxu0 0
  %694 = vmatprep.subr.bf16.mxu0 0
  %695 = vmatpush2.bf16.msra.mxu0 0
  %696 = vmatprep.mubr.bf16.mxu0 0
  %697 = vmatmul.mubr.bf16.gmra.mxu0 %v659
  %v698 = vpop.f32.mrf.mxu0
  %v699 = vadd.f32 %v632, %v698
  %v700 = vpop.f32.mrf.mxu0
  %v701 = vpop.f32.mrf.mxu0
  %v702 = vadd.f32 %v635, %v701
  %v703 = vpop.f32.mrf.mxu0
  %704 = vmatprep.mubr.bf16.mxu0 0
  %705 = vmatmul.mubr.bf16.gmra.mxu0 %v662
  %v706 = vpop.f32.mrf.mxu0
  %v707 = vadd.f32 %v640, %v706
  %v708 = vpop.f32.mrf.mxu0
  %v709 = vpop.f32.mrf.mxu0
  %v710 = vadd.f32 %v643, %v709
  %v711 = vpop.f32.mrf.mxu0
  %712 = vdwg.mxu0
  %v713 = vpack.c.bf16 %v702, %v699
  %v714 = vpack.c.bf16 %v710, %v707
  %v715 = vld [vmem:[%s4] sm:$0xff]
  %v716 = vld [vmem:[%s4 + $0x8] sm:$0xff]
  %v717 = vld [vmem:[%s4 + $0x10] sm:$0xff]
  %v718 = vld [vmem:[%s4 + $0x18] sm:$0xff]
  %vm719 = vcmask 64512
  %v721 = vsel %vm719, %v713, 0
  %v724 = vsel %vm719, %v714, 0
  %726 = vmatprep.subr.bf16.mxu0 0
  %727 = vmatpush1.bf16.xpose.msra.mxu0 0
  %728 = vmatprep.subr.bf16.mxu0 0
  %729 = vmatpush1.bf16.xpose.msra.mxu0 0
  %730 = vmatprep.subr.bf16.mxu0 0
  %731 = vmatpush1.bf16.xpose.msra.mxu0 0
  %732 = vmatprep.subr.bf16.mxu0 0
  %733 = vmatpush1.bf16.xpose.msra.mxu0 0
  %734 = vmatprep.subr.bf16.mxu0 0
  %735 = vmatpush1.bf16.xpose.msra.mxu0 0
  %736 = vmatprep.subr.bf16.mxu0 0
  %737 = vmatpush1.bf16.xpose.msra.mxu0 0
  %738 = vmatprep.subr.bf16.mxu0 0
  %739 = vmatpush1.bf16.xpose.msra.mxu0 %v724
  %740 = vmatprep.subr.bf16.mxu0 0
  %741 = vmatpush1.bf16.xpose.msra.mxu0 %v721
  %742 = vmatprep.subr.bf16.mxu0 0
  %743 = vmatpush2.bf16.xpose.msra.mxu0 0
  %744 = vmatprep.subr.bf16.mxu0 0
  %745 = vmatpush2.bf16.xpose.msra.mxu0 0
  %746 = vmatprep.subr.bf16.mxu0 0
  %747 = vmatpush2.bf16.xpose.msra.mxu0 0
  %748 = vmatprep.subr.bf16.mxu0 0
  %749 = vmatpush2.bf16.xpose.msra.mxu0 0
  %750 = vmatprep.subr.bf16.mxu0 0
  %751 = vmatpush2.bf16.xpose.msra.mxu0 0
  %752 = vmatprep.subr.bf16.mxu0 0
  %753 = vmatpush2.bf16.xpose.msra.mxu0 0
  %754 = vmatprep.subr.bf16.mxu0 0
  %755 = vmatpush2.bf16.xpose.msra.mxu0 0
  %756 = vmatprep.subr.bf16.mxu0 0
  %757 = vmatpush2.bf16.xpose.msra.mxu0 0
  %758 = vmatprep.mubr.bf16.mxu0 0
  %759 = vmatmul.mubr.bf16.gmra.mxu0 %v721
  %v760 = vpop.f32.mrf.mxu0
  %v761 = vadd.f32 0.0, %v760
  %v762 = vpop.f32.mrf.mxu0
  %v763 = vpop.f32.mrf.mxu0
  %v764 = vadd.f32 0.0, %v763
  %v765 = vpop.f32.mrf.mxu0
  %766 = vmatprep.mubr.bf16.mxu0 0
  %767 = vmatmul.mubr.bf16.gmra.mxu0 %v724
  %v768 = vpop.f32.mrf.mxu0
  %v769 = vadd.f32 0.0, %v768
  %v770 = vpop.f32.mrf.mxu0
  %v771 = vpop.f32.mrf.mxu0
  %v772 = vadd.f32 0.0, %v771
  %v773 = vpop.f32.mrf.mxu0
  %774 = vdwg.mxu0
  %vm775 = vcmp.ne.f32.partialorder %v761, 0.0
  %vm776 = vcmp.ne.f32.partialorder %v764, 0.0
  %vm777 = vcmp.ne.f32.partialorder %v769, 0.0
  %vm778 = vcmp.ne.f32.partialorder %v772, 0.0
  %v779 = vmul.f32 %v761, 0.1
  %v780 = vmul.f32 %v764, 0.1
  %v781 = vmul.f32 %v769, 0.1
  %v782 = vmul.f32 %v772, 0.1
  %v783 = vmax.f32 %v761, %v779
  %v784 = vmax.f32 %v764, %v780
  %v785 = vmax.f32 %v769, %v781
  %v786 = vmax.f32 %v772, %v782
  %v787 = vadd.f32 %v783, %v715
  %v788 = vadd.f32 %v784, %v716
  %v789 = vadd.f32 %v785, %v717
  %v790 = vadd.f32 %v786, %v718
  %v791 = vsel %vm775, %v787, -1e+16
  %v792 = vsel %vm776, %v788, -1e+16
  %v793 = vsel %vm777, %v789, -1e+16
  %v794 = vsel %vm778, %v790, -1e+16
  %v795 = vsel %vm234, %v791, -inf
  %796 = vmax.xlane.f32.xlu0 %v795
  %v797 = vpop.xlane.xlu0 %796
  %v798 = vsel %vm234, %v792, -inf
  %799 = vmax.xlane.f32.xlu0 %v798
  %v800 = vpop.xlane.xlu0 %799
  %v801 = vsel %vm234, %v793, -inf
  %802 = vmax.xlane.f32.xlu0 %v801
  %v803 = vpop.xlane.xlu0 %802
  %v804 = vsel %vm234, %v794, -inf
  %805 = vmax.xlane.f32.xlu0 %v804
  %v806 = vpop.xlane.xlu0 %805
  %v807 = vsub.f32 %v791, %v797
  %v808 = vsub.f32 %v792, %v800
  %v809 = vsub.f32 %v793, %v803
  %v810 = vsub.f32 %v794, %v806
  %v811 = vmul.f32 %v807, 1.442695
  %v812 = vpow.pop %v811
  %v813 = vmul.f32 %v808, 1.442695
  %v814 = vpow.pop %v813
  %v815 = vmul.f32 %v809, 1.442695
  %v816 = vpow.pop %v815
  %v817 = vmul.f32 %v810, 1.442695
  %v818 = vpow.pop %v817
  %v819 = vsel %vm234, %v812, 0.0
  %820 = vadd.xlane.f32.xlu0 %v819
  %v821 = vpop.xlane.xlu0 %820
  %v822 = vsel %vm234, %v814, 0.0
  %823 = vadd.xlane.f32.xlu0 %v822
  %v824 = vpop.xlane.xlu0 %823
  %v825 = vsel %vm234, %v816, 0.0
  %826 = vadd.xlane.f32.xlu0 %v825
  %v827 = vpop.xlane.xlu0 %826
  %v828 = vsel %vm234, %v818, 0.0
  %829 = vadd.xlane.f32.xlu0 %v828
  %v830 = vpop.xlane.xlu0 %829
  %v831 = vrcp.pop %v821
  %v832 = vrcp.pop %v824
  %v833 = vrcp.pop %v827
  %v834 = vrcp.pop %v830
  %v835 = vmul.f32 %v812, %v831
  %v836 = vmul.f32 %v814, %v832
  %v837 = vmul.f32 %v816, %v833
  %v838 = vmul.f32 %v818, %v834
  %v839 = vpack.c.bf16 %v836, %v835
  %v840 = vpack.c.bf16 %v838, %v837
  %v842 = vsel %vm234, %v839, 0
  %v845 = vsel %vm234, %v840, 0
  %847 = vmatprep.subr.bf16.mxu0 0
  %848 = vmatpush1.bf16.msra.mxu0 0
  %849 = vmatprep.subr.bf16.mxu0 0
  %850 = vmatpush1.bf16.msra.mxu0 0
  %851 = vmatprep.subr.bf16.mxu0 0
  %852 = vmatpush1.bf16.msra.mxu0 0
  %853 = vmatprep.subr.bf16.mxu0 0
  %854 = vmatpush1.bf16.msra.mxu0 0
  %855 = vmatprep.subr.bf16.mxu0 0
  %856 = vmatpush1.bf16.msra.mxu0 0
  %857 = vmatprep.subr.bf16.mxu0 0
  %858 = vmatpush1.bf16.msra.mxu0 0
  %859 = vmatprep.subr.bf16.mxu0 0
  %860 = vmatpush1.bf16.msra.mxu0 %v714
  %861 = vmatprep.subr.bf16.mxu0 0
  %862 = vmatpush1.bf16.msra.mxu0 %v713
  %863 = vmatprep.subr.bf16.mxu0 0
  %864 = vmatpush2.bf16.msra.mxu0 0
  %865 = vmatprep.subr.bf16.mxu0 0
  %866 = vmatpush2.bf16.msra.mxu0 0
  %867 = vmatprep.subr.bf16.mxu0 0
  %868 = vmatpush2.bf16.msra.mxu0 0
  %869 = vmatprep.subr.bf16.mxu0 0
  %870 = vmatpush2.bf16.msra.mxu0 0
  %871 = vmatprep.subr.bf16.mxu0 0
  %872 = vmatpush2.bf16.msra.mxu0 0
  %873 = vmatprep.subr.bf16.mxu0 0
  %874 = vmatpush2.bf16.msra.mxu0 0
  %875 = vmatprep.subr.bf16.mxu0 0
  %876 = vmatpush2.bf16.msra.mxu0 0
  %877 = vmatprep.subr.bf16.mxu0 0
  %878 = vmatpush2.bf16.msra.mxu0 0
  %879 = vmatprep.mubr.bf16.mxu0 0
  %880 = vmatmul.mubr.bf16.gmra.mxu0 %v842
  %v881 = vpop.f32.mrf.mxu0
  %v882 = vadd.f32 0.0, %v881
  %v883 = vpop.f32.mrf.mxu0
  %v884 = vpop.f32.mrf.mxu0
  %v885 = vadd.f32 0.0, %v884
  %v886 = vpop.f32.mrf.mxu0
  %887 = vmatprep.mubr.bf16.mxu0 0
  %888 = vmatmul.mubr.bf16.gmra.mxu0 %v845
  %v889 = vpop.f32.mrf.mxu0
  %v890 = vadd.f32 0.0, %v889
  %v891 = vpop.f32.mrf.mxu0
  %v892 = vpop.f32.mrf.mxu0
  %v893 = vadd.f32 0.0, %v892
  %v894 = vpop.f32.mrf.mxu0
  %895 = vdwg.mxu0
  %896 = vst.msk [vmem:[%s5] sm:$0xff] %vm719, %v882
  %897 = vst.msk [vmem:[%s5 + $0x8] sm:$0xff] %vm719, %v885
  %898 = vst.msk [vmem:[%s5 + $0x10] sm:$0xff] %vm719, %v890
  %899 = vst.msk [vmem:[%s5 + $0x18] sm:$0xff] %vm719, %v893
  // Predicated region
  $region22: #{gat_forward.1} parent=0 // pred_check
    _
  $region23: #{gat_forward.1} parent=0 // pred_check_branch
    %901 = sbr.rel (0) target = $region25
  $region24: #{gat_forward.1} parent=0 // pred_region
    _
  $region25: #{gat_forward.1} parent=0 // pred_fallthru
    _
  // Predicated region
  $region26: #{gat_forward.1} parent=0 // pred_check
    _
  $region27: #{gat_forward.1} parent=0 // pred_check_branch
    %903 = sbr.rel (0) target = $region29
  $region28: #{gat_forward.1} parent=0 // pred_region
    _
  $region29: #{gat_forward.1} parent=0 // pred_fallthru
    _

</llo_original>
